<compile_context>
chip_gen: v7x
topology: tpu7x:2x2x1
jax: 0.10.0
libtpu: 0.0.40
codegen_flags: <defaults>
</compile_context>

<pallas_src>
import functools

import jax
import jax.numpy as jnp
from jax.experimental import pallas as pl
from jax.experimental.pallas import tpu as pltpu

EPS = 1e-6


def _iou_loss_kernel(x_ref, t_ref, o_ref, acc_ref, *, n_total):
    # x_ref:  (1, C, TILE_N) logits block for batch b
    # t_ref:  (1, 1, TILE_N) int32 labels block for batch b
    # o_ref:  (1, 1, 1) per-batch loss (written once, on the last N step)
    # acc_ref: (1, 1) f32 running intersection for batch b
    n = pl.program_id(1)

    @pl.when(n == 0)
    def _init():
        acc_ref[...] = jnp.zeros_like(acc_ref)

    x = x_ref[0].astype(jnp.float32)               # (C, TILE_N)
    t = t_ref[0]                                   # (1, TILE_N) int32
    num_classes = x.shape[0]

    # Numerically stable masked-softmax intersection:
    #   inter contribution per position = softmax(x)[target] = e[target]/sum_C(e)
    m = jnp.max(x, axis=0, keepdims=True)          # (1, TILE_N)
    e = jnp.exp(x - m)                             # (C, TILE_N)
    denom = jnp.sum(e, axis=0, keepdims=True)      # (1, TILE_N)

    cls = jax.lax.broadcasted_iota(jnp.int32, (num_classes, 1), 0)   # (C, 1)
    num = jnp.sum(jnp.where(cls == t, e, 0.0), axis=0, keepdims=True)  # (1, TILE_N)

    acc_ref[...] += jnp.sum(num / denom, axis=(0, 1), keepdims=True)   # (1, 1)

    @pl.when(n == pl.num_programs(1) - 1)
    def _finalize():
        inter = acc_ref[...]                           # (1, 1)
        # cardinality = sum(softmax) + sum(one_hot) = N + N exactly
        union = (2.0 * float(n_total)) - inter
        o_ref[0] = 1.0 - (inter + EPS) / (union + EPS)


def _pick_tile_n(n, c, itemsize):
    """Largest lane-dense tile (multiple of 128) dividing N, capped by bytes."""
    max_block_bytes = 8 * 1024 * 1024   # x2 pipeline buffers stays tiny vs. VMEM
    for t in (4096, 2048, 1024, 512, 256, 128):
        if n % t == 0 and c * t * itemsize <= max_block_bytes:
            return t
    # Small / irregular N: one full-extent block along N (equal-to-dim is legal).
    return n


def iou_loss(logits: jax.Array, targets: jax.Array) -> jax.Array:
    """Pallas IoU loss. logits: (B, C, N) f32/bf16, targets: (B, N) int."""
    B, C, N = logits.shape
    itemsize = jnp.dtype(logits.dtype).itemsize
    tile_n = _pick_tile_n(N, C, itemsize)
    n_tiles = N // tile_n

    targets3 = targets.astype(jnp.int32).reshape(B, 1, N)

    kernel = functools.partial(_iou_loss_kernel, n_total=N)

    per_batch = pl.pallas_call(
        kernel,
        out_shape=jax.ShapeDtypeStruct((B, 1, 1), jnp.float32),
        grid_spec=pltpu.PrefetchScalarGridSpec(
            num_scalar_prefetch=0,
            grid=(B, n_tiles),
            in_specs=[
                pl.BlockSpec((1, C, tile_n), lambda b, n: (b, 0, n)),
                pl.BlockSpec((1, 1, tile_n), lambda b, n: (b, 0, n)),
            ],
            out_specs=pl.BlockSpec((1, 1, 1), lambda b, n: (b, 0, 0)),
            scratch_shapes=[pltpu.VMEM((1, 1), jnp.float32)],
        ),
        compiler_params=pltpu.CompilerParams(
            dimension_semantics=("parallel", "arbitrary"),
            vmem_limit_bytes=48 * 1024 * 1024,
        ),
    )(logits, targets3)

    # Tiny O(B) mean over per-batch (1 - IoU) terms.
    return jnp.mean(per_batch[:, 0, 0])


if __name__ == "__main__":
    key = jax.random.PRNGKey(0)
    k1, k2 = jax.random.split(key)

    B, C, N = 2, 4, 16
    logits = jax.random.normal(k1, (B, C, N), dtype=jnp.float32)
    targets = jax.random.randint(k2, (B, N), 0, C, dtype=jnp.int32)

    loss = jax.block_until_ready(iou_loss(logits, targets))

    # Pure-JAX reference mirroring the PyTorch forward exactly.
    soft = jax.nn.softmax(logits, axis=1)                    # (B, C, N)
    soft_t = jnp.swapaxes(soft, 1, 2)                        # (B, N, C)
    oh = jax.nn.one_hot(targets, C, dtype=jnp.float32)       # (B, N, C)
    inter = jnp.sum(soft_t * oh, axis=(1, 2))
    card = jnp.sum(soft_t + oh, axis=(1, 2))
    iou = (inter + EPS) / (card - inter + EPS)
    ref = jnp.mean(1.0 - iou)

    assert jnp.allclose(loss, ref, atol=1e-5, rtol=1e-5), (float(loss), float(ref))
    print("KERNEL_OK")
</pallas_src>

<mosaic_0001>
module attributes {stable_mosaic.version = 11 : i64} {
  func.func @_iou_loss_kernel(%arg0: i32, %arg1: i32, %arg2: memref<1x4x16xf32, #tpu.memory_space<vmem>>, %arg3: memref<1x1x16xi32, #tpu.memory_space<vmem>>, %arg4: memref<1x1x1xf32, #tpu.memory_space<vmem>>, %arg5: memref<1x1xf32, #tpu.memory_space<vmem>>) attributes {dimension_semantics = [#tpu.dimension_semantics<parallel>, #tpu.dimension_semantics<arbitrary>], iteration_bounds = array<i64: 2, 1>, scalar_prefetch = 0 : i64, scratch_operands = 1 : i64, tpu.core_type = #tpu.core_type<tc>, window_params = [{transform_indices = @transform_0, window_bounds = array<i64: 1, 4, 16>}, {transform_indices = @transform_1, window_bounds = array<i64: 1, 1, 16>}, {transform_indices = @transform_2, window_bounds = array<i64: 1, 1, 1>}]} {
    %c0_i32 = arith.constant 0 : i32
    %0 = arith.cmpi eq, %arg1, %c0_i32 : i32
    %1 = arith.extui %0 : i1 to i32
    %c0_i32_0 = arith.constant 0 : i32
    %2 = arith.cmpi ne, %1, %c0_i32_0 : i32
    scf.if %2 {
      %cst_16 = arith.constant 0.000000e+00 : f32
      %34 = vector.broadcast %cst_16 : f32 to vector<1x1xf32>
      %c0_17 = arith.constant 0 : index
      %c0_18 = arith.constant 0 : index
      %35 = vector.load %arg5[%c0_17, %c0_18] : memref<1x1xf32, #tpu.memory_space<vmem>>, vector<1x1xf32>
      tpu.vector_store %arg5[%c0_17, %c0_18], %34 {strides = array<i32>} : memref<1x1xf32, #tpu.memory_space<vmem>>, vector<1x1xf32>,
    } else {
    }
    %c0 = arith.constant 0 : index
    %c0_1 = arith.constant 0 : index
    %c0_2 = arith.constant 0 : index
    %3 = vector.load %arg2[%c0, %c0_1, %c0_2] : memref<1x4x16xf32, #tpu.memory_space<vmem>>, vector<1x4x16xf32>
    %4 = vector.shape_cast %3 : vector<1x4x16xf32> to vector<4x16xf32>
    %c0_3 = arith.constant 0 : index
    %c0_4 = arith.constant 0 : index
    %c0_5 = arith.constant 0 : index
    %5 = vector.load %arg3[%c0_3, %c0_4, %c0_5] : memref<1x1x16xi32, #tpu.memory_space<vmem>>, vector<1x1x16xi32>
    %6 = vector.shape_cast %5 : vector<1x1x16xi32> to vector<1x16xi32>
    %cst = arith.constant dense<0xFF800000> : vector<16xf32>
    %7 = vector.multi_reduction <maximumf>, %4, %cst [0] : vector<4x16xf32> to vector<16xf32>
    %8 = vector.shape_cast %7 : vector<16xf32> to vector<1x16xf32>
    %9 = vector.broadcast %8 : vector<1x16xf32> to vector<4x16xf32>
    %10 = arith.subf %4, %9 : vector<4x16xf32>
    %11 = math.exp %10 : vector<4x16xf32>
    %cst_6 = arith.constant dense<0.000000e+00> : vector<16xf32>
    %12 = vector.multi_reduction <add>, %11, %cst_6 [0] : vector<4x16xf32> to vector<16xf32>
    %13 = vector.shape_cast %12 : vector<16xf32> to vector<1x16xf32>
    %14 = tpu.iota {dimensions = array<i32: 0>} : vector<4x1xi32>
    %15 = vector.broadcast %14 : vector<4x1xi32> to vector<4x16xi32>
    %16 = vector.broadcast %6 : vector<1x16xi32> to vector<4x16xi32>
    %17 = arith.cmpi eq, %15, %16 : vector<4x16xi32>
    %cst_7 = arith.constant 0.000000e+00 : f32
    %18 = vector.broadcast %cst_7 : f32 to vector<4x16xf32>
    %19 = arith.select %17, %11, %18 : vector<4x16xi1>, vector<4x16xf32>
    %cst_8 = arith.constant dense<0.000000e+00> : vector<16xf32>
    %20 = vector.multi_reduction <add>, %19, %cst_8 [0] : vector<4x16xf32> to vector<16xf32>
    %21 = vector.shape_cast %20 : vector<16xf32> to vector<1x16xf32>
    %c0_9 = arith.constant 0 : index
    %c0_10 = arith.constant 0 : index
    %22 = vector.load %arg5[%c0_9, %c0_10] : memref<1x1xf32, #tpu.memory_space<vmem>>, vector<1x1xf32>
    %23 = arith.divf %21, %13 : vector<1x16xf32>
    %24 = vector.shape_cast %23 : vector<1x16xf32> to vector<1x1x16xf32>
    %cst_11 = arith.constant dense<0.000000e+00> : vector<1xf32>
    %25 = vector.multi_reduction <add>, %24, %cst_11 [1, 2] : vector<1x1x16xf32> to vector<1xf32>
    %26 = vector.shape_cast %25 : vector<1xf32> to vector<1x1x1xf32>
    %27 = vector.extract %26[0, 0, 0] : f32 from vector<1x1x1xf32>
    %28 = vector.broadcast %27 : f32 to vector<1x1xf32>
    %29 = arith.addf %22, %28 : vector<1x1xf32>
    %c0_12 = arith.constant 0 : index
    %c0_13 = arith.constant 0 : index
    %30 = vector.load %arg5[%c0_12, %c0_13] : memref<1x1xf32, #tpu.memory_space<vmem>>, vector<1x1xf32>
    tpu.vector_store %arg5[%c0_12, %c0_13], %29 {strides = array<i32>} : memref<1x1xf32, #tpu.memory_space<vmem>>, vector<1x1xf32>,
    %c0_i32_14 = arith.constant 0 : i32
    %31 = arith.cmpi eq, %arg1, %c0_i32_14 : i32
    %32 = arith.extui %31 : i1 to i32
    %c0_i32_15 = arith.constant 0 : i32
    %33 = arith.cmpi ne, %32, %c0_i32_15 : i32
    scf.if %33 {
      %c0_16 = arith.constant 0 : index
      %c0_17 = arith.constant 0 : index
      %34 = vector.load %arg5[%c0_16, %c0_17] : memref<1x1xf32, #tpu.memory_space<vmem>>, vector<1x1xf32>
      %cst_18 = arith.constant 3.200000e+01 : f32
      %35 = vector.broadcast %cst_18 : f32 to vector<1x1xf32>
      %36 = arith.subf %35, %34 : vector<1x1xf32>
      %cst_19 = arith.constant 9.99999997E-7 : f32
      %37 = vector.broadcast %cst_19 : f32 to vector<1x1xf32>
      %38 = arith.addf %34, %37 : vector<1x1xf32>
      %cst_20 = arith.constant 9.99999997E-7 : f32
      %39 = vector.broadcast %cst_20 : f32 to vector<1x1xf32>
      %40 = arith.addf %36, %39 : vector<1x1xf32>
      %41 = arith.divf %38, %40 : vector<1x1xf32>
      %cst_21 = arith.constant 1.000000e+00 : f32
      %42 = vector.broadcast %cst_21 : f32 to vector<1x1xf32>
      %43 = arith.subf %42, %41 : vector<1x1xf32>
      %c0_22 = arith.constant 0 : index
      %c0_23 = arith.constant 0 : index
      %c0_24 = arith.constant 0 : index
      %44 = vector.load %arg4[%c0_22, %c0_23, %c0_24] : memref<1x1x1xf32, #tpu.memory_space<vmem>>, vector<1x1x1xf32>
      %45 = vector.shape_cast %44 : vector<1x1x1xf32> to vector<1x1xf32>
      %46 = vector.shape_cast %43 : vector<1x1xf32> to vector<1x1x1xf32>
      tpu.vector_store %arg4[%c0_22, %c0_23, %c0_24], %46 {strides = array<i32>} : memref<1x1x1xf32, #tpu.memory_space<vmem>>, vector<1x1x1xf32>,
    } else {
    }
    return
  }
  func.func @transform_0(%arg0: i32, %arg1: i32) -> (i32, i32, i32) {
    %c0_i32 = arith.constant 0 : i32
    %c0_i32_0 = arith.constant 0 : i32
    return %arg0, %c0_i32, %arg1 : i32, i32, i32
  }
  func.func @transform_1(%arg0: i32, %arg1: i32) -> (i32, i32, i32) {
    %c0_i32 = arith.constant 0 : i32
    %c0_i32_0 = arith.constant 0 : i32
    return %arg0, %c0_i32, %arg1 : i32, i32, i32
  }
  func.func @transform_2(%arg0: i32, %arg1: i32) -> (i32, i32, i32) {
    %c0_i32 = arith.constant 0 : i32
    %c0_i32_0 = arith.constant 0 : i32
    %c0_i32_1 = arith.constant 0 : i32
    return %arg0, %c0_i32, %c0_i32_0 : i32, i32, i32
  }
}

</mosaic_0001>

<llo_original>
// kernel: tpu_custom_call.1
$region0: #{tpu_custom_call.1}
  #allocation0 [shape = 'u32[]', space=smem, size = 0x4, offset = 0x4, fixed_abs, tag = 'smem constant byte address 0x4 - core index']
  #allocation1 [shape = 'u32[144,128]{1,0:T(1,128)}', space=vmem, size = 0x12000, scoped, tag = 'internal scratch']
  #allocation2 [shape = 'f32[1,1]{1,0:T(1,128)}', space=vmem, size = 0x200, scoped, tag = 'scratch operand']
  %s0 = inlined_call_operand.hbm [shape: f32[2,4,16], index: 0, kind: input, shape index: {}]
  %s1 = inlined_call_operand.vmem [shape: s32[2,1,16], index: 1, kind: input, shape index: {}]
  %s2 = inlined_call_operand.vmem [shape: f32[2,1,1], index: 2, kind: output, shape index: {}]
  %s3 = sld [smem:[#allocation0]]
  $region53: #{tpu_custom_call.1} parent=0
    _
  %s5 = ssub.s32 1, %s3
  %s6 = scalar_select 0, %s5, %s3
  $region1: #{tpu_custom_call.1} parent=0
    #allocation3 [shape = 'u8[4096]{0}', space=vmem, size = 0x1000, scoped, tag = 'input window, operand 0']
    #allocation4 [shape = 's32[2]{0}', space=sflag, size = 0x8, scoped, tag = 'scoped memory for tpu_custom_call.1']
    %7 = vsyncpa [#allocation4], 0
    %s8 = scalar_lea.sflag [#allocation4], 1
    %9 = vsyncpa %s8, 0
    loop: start=0, step=1, limit=4
    $region2: #{tpu_custom_call.1} parent=1 // loop_pre_header
      _
    $region3: #{tpu_custom_call.1} parent=1 // loop_header
      %s11 = sphi 0, %s15
      %p12 = scmp.ge.s32.totalorder %s11, 4
      %s18 = sphi 0, %s30
      %s19 = sphi 0, %s26
      %s20 = sphi 0, %s18
      %s21 = sphi 0, %s19
      %s22 = sphi 0, %s20
      %s23 = sphi 0, %s21
      %s35 = sphi 0, %s37
      %s38 = sphi 0, %s35
      %s39 = sphi 0, %s38
      %s55 = sphi 0, %s39
      %s63 = sphi 0, %s65
      %s66 = sphi 0, %s63
      %s67 = sphi 0, %s66
      %s83 = sphi 0, %s67
      %s89 = sphi 0, %s91
      %s92 = sphi 0, %s89
      %s93 = sphi 0, %s92
      %s109 = sphi 0, %s93
    $region4: #{tpu_custom_call.1} parent=1 // loop_header_branch
      %14 = sbr.rel (%p12) target = $region8
    $region5: #{tpu_custom_call.1} parent=1 // loop_body
      %s16 = ssub.s32 %s11, 1
      %s17 = ssub.s32 %s11, 2
      %s24 = sadd.s32 1, %s19
      %p25 = scmp.ge.s32.totalorder %s24, 1
      %s26 = scalar_select %p25, 0, %s24
      %s27 = sadd.s32 1, %s18
      %s28 = scalar_select %p25, %s27, %s18
      %p29 = scmp.ge.s32.totalorder %s28, 2
      %s30 = scalar_select %p29, 0, %s28
      %s31 = ssub.s32 %s18, %s30
      %s32 = ssub.s32 %s19, %s26
      %s33 = sor.u32 %s31, %s32
      %p34 = scmp.eq.s32.totalorder %s33, 0
      %s36 = sadd.s32 %s35, 1
      %s37 = scalar_select %p34, %s35, %s36
      %p40 = pneg %p34
      %p41 = scmp.eq.s32.totalorder %s11, 1
      %p42 = por %p40, %p41
      %p43 = scmp.ne.s32.totalorder %s35, %s38
      %p44 = scmp.eq.s32.totalorder %s11, 0
      %p45 = por %p43, %p44
      %p46 = scmp.ne.s32.totalorder %s35, %s38
      %p47 = scmp.eq.s32.totalorder %s16, 1
      %p48 = por %p46, %p47
      %p49 = scmp.ne.s32.totalorder %s38, %s39
      %p50 = scmp.eq.s32.totalorder %s16, 0
      %p51 = por %p49, %p50
      %p52 = scmp.ne.s32.totalorder %s38, %s39
      %p53 = scmp.eq.s32.totalorder %s17, 1
      %p54 = por %p52, %p53
      %p56 = scmp.ne.s32.totalorder %s39, %s55
      %p57 = scmp.eq.s32.totalorder %s17, 0
      %p58 = por %p56, %p57
      %s59 = ssub.s32 %s18, %s30
      %s60 = ssub.s32 %s19, %s26
      %s61 = sor.u32 %s59, %s60
      %p62 = scmp.eq.s32.totalorder %s61, 0
      %s64 = sadd.s32 %s63, 1
      %s65 = scalar_select %p62, %s63, %s64
      %p68 = pneg %p62
      %p69 = scmp.eq.s32.totalorder %s11, 1
      %p70 = por %p68, %p69
      %p71 = scmp.ne.s32.totalorder %s63, %s66
      %p72 = scmp.eq.s32.totalorder %s11, 0
      %p73 = por %p71, %p72
      %p74 = scmp.ne.s32.totalorder %s63, %s66
      %p75 = scmp.eq.s32.totalorder %s16, 1
      %p76 = por %p74, %p75
      %p77 = scmp.ne.s32.totalorder %s66, %s67
      %p78 = scmp.eq.s32.totalorder %s16, 0
      %p79 = por %p77, %p78
      %p80 = scmp.ne.s32.totalorder %s66, %s67
      %p81 = scmp.eq.s32.totalorder %s17, 1
      %p82 = por %p80, %p81
      %p84 = scmp.ne.s32.totalorder %s67, %s83
      %p85 = scmp.eq.s32.totalorder %s17, 0
      %p86 = por %p84, %p85
      %s87 = ssub.s32 %s18, %s30
      %p88 = scmp.eq.s32.totalorder %s87, 0
      %s90 = sadd.s32 %s89, 1
      %s91 = scalar_select %p88, %s89, %s90
      %p94 = pneg %p88
      %p95 = scmp.eq.s32.totalorder %s11, 1
      %p96 = por %p94, %p95
      %p97 = scmp.ne.s32.totalorder %s89, %s92
      %p98 = scmp.eq.s32.totalorder %s11, 0
      %p99 = por %p97, %p98
      %p100 = scmp.ne.s32.totalorder %s89, %s92
      %p101 = scmp.eq.s32.totalorder %s16, 1
      %p102 = por %p100, %p101
      %p103 = scmp.ne.s32.totalorder %s92, %s93
      %p104 = scmp.eq.s32.totalorder %s16, 0
      %p105 = por %p103, %p104
      %p106 = scmp.ne.s32.totalorder %s92, %s93
      %p107 = scmp.eq.s32.totalorder %s17, 1
      %p108 = por %p106, %p107
      %p110 = scmp.ne.s32.totalorder %s93, %s109
      %p111 = scmp.eq.s32.totalorder %s17, 0
      %p112 = por %p110, %p111
      %p113 = scmp.le.s32.totalorder 1, %s11
      %p114 = scmp.lt.s32.totalorder %s11, 3
      %p115 = pnand %p113, %p114
      %p116 = pneg %p115
      // Predicated region
      $region9: #{tpu_custom_call.1} parent=5 // pred_check
        _
      $region10: #{tpu_custom_call.1} parent=5 // pred_check_branch
        %118 = sbr.rel (%p115) target = $region12
      $region11: #{tpu_custom_call.1} parent=5 // pred_region
        %s119 = ssub.s32 %s11, 1
      $region12: #{tpu_custom_call.1} parent=5 // pred_fallthru
        _
      %p120 = scmp.lt.s32.totalorder %s11, 2
      // Predicated region
      $region13: #{tpu_custom_call.1} parent=5 // pred_check
        %p121 = pneg %p120
      $region14: #{tpu_custom_call.1} parent=5 // pred_check_branch
        %123 = sbr.rel (%p121) target = $region16
      $region15: #{tpu_custom_call.1} parent=5 // pred_region
        // Predicated region
        $region17: #{tpu_custom_call.1} parent=15 // pred_check
          %p124 = pneg %p45
        $region18: #{tpu_custom_call.1} parent=15 // pred_check_branch
          %126 = sbr.rel (%p124) target = $region20
        $region19: #{tpu_custom_call.1} parent=15 // pred_region
          %s127 = sand.u32 %s35, 1
          %s128 = scalar_lea.sflag [#allocation4], %s127
          %s129 = sand.u32 %s35, 1
          %s130 = smul.addr %s129, 4
          %s131 = scalar_lea.vmem [#allocation3], %s130
          %s133 = ssub.s32 64, 64
          %134 = vsyncadd %s128, %s133
          %s135 = sadd.s32 %s19, %s18
          %s136 = smul.addr %s135, 64
          %s137 = scalar_lea.hbm %s0, %s136
          %s139 = sshll.u32 %s131, 4
          %s140 = int_to_ptr.vmem [resolvable:$true] %s139
          %142 = dma.hbm_to_vmem [thread:$0]  %s137, 64, %s140, %s128
        $region20: #{tpu_custom_call.1} parent=15 // pred_fallthru
          _
        // Predicated region
        $region21: #{tpu_custom_call.1} parent=15 // pred_check
          %p143 = pneg %p73
        $region22: #{tpu_custom_call.1} parent=15 // pred_check_branch
          %145 = sbr.rel (%p143) target = $region24
        $region23: #{tpu_custom_call.1} parent=15 // pred_region
          %p146 = scmp.lt.s32.totalorder %s18, 1
          %s147 = scalar_select %p146, %s18, 1
          %p148 = scmp.lt.s32.totalorder %s19, 0
          %s149 = scalar_select %p148, %s19, 0
          %s150 = sadd.s32 %s149, %s147
          %s151 = scalar_lea.vmem %s1, %s150
        $region24: #{tpu_custom_call.1} parent=15 // pred_fallthru
          _
      $region16: #{tpu_custom_call.1} parent=5 // pred_fallthru
        _
      %p152 = scmp.le.s32.totalorder 1, %s11
      %p153 = scmp.lt.s32.totalorder %s11, 3
      %p154 = pnand %p152, %p153
      %p155 = pneg %p154
      // Predicated region
      $region25: #{tpu_custom_call.1} parent=5 // pred_check
        _
      $region26: #{tpu_custom_call.1} parent=5 // pred_check_branch
        %157 = sbr.rel (%p154) target = $region28
      $region27: #{tpu_custom_call.1} parent=5 // pred_region
        %s158 = ssub.s32 %s11, 1
        %s159 = sand.u32 %s38, 1
        %s160 = scalar_lea.sflag [#allocation4], %s159
        %s161 = sand.u32 %s38, 1
        %s162 = smul.addr %s161, 4
        %s163 = scalar_lea.vmem [#allocation3], %s162
        // Predicated region
        $region29: #{tpu_custom_call.1} parent=27 // pred_check
          %p164 = pneg %p51
        $region30: #{tpu_custom_call.1} parent=27 // pred_check_branch
          %166 = sbr.rel (%p164) target = $region32
        $region31: #{tpu_custom_call.1} parent=27 // pred_region
          %167 = dma.done %s160, 64
        $region32: #{tpu_custom_call.1} parent=27 // pred_fallthru
          _
        %s168 = sand.u32 %s38, 1
        %s169 = scalar_lea.sflag [#allocation4], %s168
        %s170 = sand.u32 %s38, 1
        %s171 = smul.addr %s170, 4
        %s172 = scalar_lea.vmem [#allocation3], %s171
        %p173 = pneg %p51
        %p174 = pneg %p48
        %p175 = scmp.lt.s32.totalorder %s20, 1
        %s176 = scalar_select %p175, %s20, 1
        %p177 = scmp.lt.s32.totalorder %s21, 0
        %s178 = scalar_select %p177, %s21, 0
        %s179 = sadd.s32 %s178, %s176
        %s180 = scalar_lea.vmem %s1, %s179
        %p181 = pneg %p79
        %p182 = pneg %p76
        %p183 = pneg %p105
        %p184 = pneg %p102
        %p185 = scmp.lt.s32.totalorder %s20, 1
        %s186 = scalar_select %p185, %s20, 1
        %s187 = scalar_lea.vmem %s2, %s186
        %p188 = scmp.lt.s32.totalorder %s20, 1
        %s189 = scalar_select %p188, %s20, 1
        %p190 = scmp.lt.s32.totalorder %s21, 0
        %s191 = scalar_select %p190, %s21, 0
        %s192 = sadd.s32 %s191, %s189
        %s193 = scalar_lea.vmem %s1, %s192
        %p194 = scmp.lt.s32.totalorder %s20, 1
        %s195 = scalar_select %p194, %s20, 1
        %s196 = scalar_lea.vmem %s2, %s195
        %p197 = scmp.eq.s32.totalorder %s21, 0
        // Predicated region
        $region33: #{tpu_custom_call.1} parent=27 // pred_check
          %p198 = pneg %p197
        $region34: #{tpu_custom_call.1} parent=27 // pred_check_branch
          %200 = sbr.rel (%p198) target = $region36
        $region35: #{tpu_custom_call.1} parent=27 // pred_region
          %vm201 = vcmask 0
          %202 = vst.msk [vmem:[#allocation2] sm:$0x1] %vm201, 0.0
        $region36: #{tpu_custom_call.1} parent=27 // pred_fallthru
          _
        %v203 = vld [vmem:[%s163] sm:$0xf]
        %v204 = vld [vmem:[%s193] sm:$0x1]
        %vm205 = vcmask 125952
        %v206 = vsel %vm205, %v203, -inf
        %v207 = vrot.slane %v206, 4
        %v208 = vmax.f32 %v206, %v207
        %v209 = vrot.slane %v208, 2
        %v210 = vmax.f32 %v208, %v209
        %v211 = vrot.slane %v210, 1
        %v212 = vmax.f32 %v210, %v211
        %v213 = vsub.f32 %v203, %v212
        %v214 = vmul.f32 %v213, 1.442695
        %v215 = vpow.pop %v214
        %v216 = vsel %vm205, %v215, 0.0
        %v217 = vrot.slane %v216, 4
        %v218 = vadd.f32 %v216, %v217
        %v219 = vrot.slane %v218, 2
        %v220 = vadd.f32 %v218, %v219
        %v221 = vrot.slane %v220, 1
        %v222 = vadd.f32 %v220, %v221
        %v223 = vlaneseq
        %v224 = vshrl.u32 %v223, 7
        %v225 = vlaneseq
        %v226 = vshrl.u32 %v225, 7
        %v227 = vsub.s32 0, %v226
        %v228 = vrot.slane %v204, %v227
        %vm229 = vcmp.eq.s32.totalorder %v224, %v228
        %v230 = vsel %vm229, %v215, 0.0
        %v231 = vsel %vm205, %v230, 0.0
        %v232 = vrot.slane %v231, 4
        %v233 = vadd.f32 %v231, %v232
        %v234 = vrot.slane %v233, 2
        %v235 = vadd.f32 %v233, %v234
        %v236 = vrot.slane %v235, 1
        %v237 = vadd.f32 %v235, %v236
        %v238 = vld [vmem:[#allocation2] sm:$0x1]
        %v239 = vrcp.pop %v222
        %v240 = vmul.f32 %v237, %v239
        %vm241 = vcmask 122880
        %v242 = vsel %vm241, %v240, 0.0
        %243 = vadd.xlane.f32.xlu0 %v242
        %v244 = vpop.xlane.xlu0 %243
        %v245 = vrot.slane %v244, 4
        %v246 = vadd.f32 %v244, %v245
        %v247 = vrot.slane %v246, 2
        %v248 = vadd.f32 %v246, %v247
        %v249 = vrot.slane %v248, 1
        %v250 = vadd.f32 %v248, %v249
        %s251 = vtos %v250
        %v252 = vstv %s251
        %v253 = vadd.f32 %v238, %v252
        %vm254 = vcmask 0
        %255 = vst.msk [vmem:[#allocation2] sm:$0x1] %vm254, %v253
        // Predicated region
        $region37: #{tpu_custom_call.1} parent=27 // pred_check
          %p256 = pneg %p197
        $region38: #{tpu_custom_call.1} parent=27 // pred_check_branch
          %258 = sbr.rel (%p256) target = $region40
        $region39: #{tpu_custom_call.1} parent=27 // pred_region
          %v259 = vld [vmem:[#allocation2] sm:$0x1]
          %v260 = vsub.f32 32.0, %v259
          %v261 = vadd.f32 %v259, 1e-06
          %v262 = vadd.f32 %v260, 1e-06
          %v263 = vrcp.pop %v262
          %v264 = vmul.f32 %v261, %v263
          %v265 = vsub.f32 1.0, %v264
          %266 = vst.msk [vmem:[%s196] sm:$0x1] %vm254, %v265
        $region40: #{tpu_custom_call.1} parent=27 // pred_fallthru
          _
        %p267 = scmp.lt.s32.totalorder %s20, 1
        %s268 = scalar_select %p267, %s20, 1
        %s269 = scalar_lea.vmem %s2, %s268
        // Predicated region
        $region41: #{tpu_custom_call.1} parent=27 // pred_check
          %p270 = pneg %p102
        $region42: #{tpu_custom_call.1} parent=27 // pred_check_branch
          %272 = sbr.rel (%p270) target = $region44
        $region43: #{tpu_custom_call.1} parent=27 // pred_region
          _
        $region44: #{tpu_custom_call.1} parent=27 // pred_fallthru
          _
      $region28: #{tpu_custom_call.1} parent=5 // pred_fallthru
        _
      %p273 = scmp.le.s32.totalorder 2, %s11
      // Predicated region
      $region45: #{tpu_custom_call.1} parent=5 // pred_check
        %p274 = pneg %p273
      $region46: #{tpu_custom_call.1} parent=5 // pred_check_branch
        %276 = sbr.rel (%p274) target = $region48
      $region47: #{tpu_custom_call.1} parent=5 // pred_region
        %s277 = ssub.s32 %s11, 2
        // Predicated region
        $region49: #{tpu_custom_call.1} parent=47 // pred_check
          %p278 = pneg %p108
        $region50: #{tpu_custom_call.1} parent=47 // pred_check_branch
          %280 = sbr.rel (%p278) target = $region52
        $region51: #{tpu_custom_call.1} parent=47 // pred_region
          %p281 = scmp.lt.s32.totalorder %s22, 1
          %s282 = scalar_select %p281, %s22, 1
          %s283 = scalar_lea.vmem %s2, %s282
        $region52: #{tpu_custom_call.1} parent=47 // pred_fallthru
          _
      $region48: #{tpu_custom_call.1} parent=5 // pred_fallthru
        _
    $region6: #{tpu_custom_call.1} parent=1 // loop_footer
      %s15 = sadd.s32 1, %s11
    $region7: #{tpu_custom_call.1} parent=1 // loop_footer_branch
      %10 = sbr.rel target = $region3
    $region8: #{tpu_custom_call.1} parent=1 // loop_exit
      _
    %284 = vsyncpa [#allocation4], 1
    %s285 = scalar_lea.sflag [#allocation4], 1
    %286 = vsyncpa %s285, 1

</llo_original>
